<compile_context>
chip_gen: v7x
topology: tpu7x:2x2x1
jax: 0.10.0
libtpu: 0.0.40
codegen_flags: <defaults>
</compile_context>

<pallas_src>
import functools

import jax
import jax.numpy as jnp
from jax import lax
from jax.experimental import pallas as pl
from jax.experimental.pallas import tpu as pltpu

LANE = 128        # lane width (classifier outputs padded 4 -> 128)
NCLS = 4          # ensemble classifier outputs
NSUB = 4          # per-sub-model outputs (4 * 3 = 12 classifier inputs)


def _round_up(n, m):
    return ((n + m - 1) // m) * m


def _choose_m_tiling(batch):
    """Pick the batch tile size: MXU-native 256 rows for large batches
    (>= 2 tiles so v7x megacore shards), else batch rounded to 16 sublanes."""
    if batch >= 256:
        tm = 256
    else:
        tm = _round_up(batch, 16)
    m_pad = _round_up(batch, tm)
    return tm, m_pad


# --------------------------------------------------------------------------
# Fused kernel:  [modelA|modelB|modelC](x)  ->  concat  ->  Linear(12,4)
#                ->  masked LogSoftmax  — all in one pass over a batch tile.
# --------------------------------------------------------------------------
def _fused_ensemble_kernel(x_ref, w_sub_ref, b_sub_ref, w_cls_ref, b_cls_ref,
                           o_ref, *, ncls):
    # Stacked sub-models: h[:, 0:12] == cat(modelA(x), modelB(x), modelC(x)),
    # lanes 12..127 are exactly zero (weight/bias lanes are zero-padded).
    h = jnp.dot(x_ref[...], w_sub_ref[...],
                preferred_element_type=jnp.float32)
    h = h + b_sub_ref[...]

    # Classifier Linear(12, 4): padded rows/cols of w_cls are zero, so the
    # padded lanes of h contribute nothing.
    logits = jnp.dot(h.astype(w_cls_ref.dtype), w_cls_ref[...],
                     preferred_element_type=jnp.float32) + b_cls_ref[...]

    # Masked LogSoftmax(dim=1) over the `ncls` real lanes.
    col = lax.broadcasted_iota(jnp.int32, logits.shape, 1)
    valid = col < ncls
    neg = jnp.float32(-1e30)
    masked = jnp.where(valid, logits, neg)
    m = jnp.max(masked, axis=-1, keepdims=True)
    z = masked - m
    p = jnp.where(valid, jnp.exp(z), 0.0)
    lse = jnp.log(jnp.sum(p, axis=-1, keepdims=True))
    o_ref[...] = z - lse


@functools.partial(jax.jit, static_argnames=("ncls", "tm"))
def _pallas_fused_forward(x, w_sub, b_sub, w_cls, b_cls, *, ncls, tm):
    """x:(M,K) bf16, w_sub:(K,128) bf16, b_sub:(1,128) f32,
    w_cls:(128,128) bf16, b_cls:(1,128) f32  ->  (M,128) f32 log-probs."""
    M, K = x.shape
    assert M % tm == 0 and K % LANE == 0
    assert w_sub.shape == (K, LANE) and w_cls.shape == (LANE, LANE)
    n_tiles = M // tm

    kern = functools.partial(_fused_ensemble_kernel, ncls=ncls)

    # Deeper pipelining on the streamed x tiles only when there are enough
    # grid steps for it to matter (v7x: hide DMA latency at higher HBM BW).
    if n_tiles >= 3:
        x_spec = pl.BlockSpec((tm, K), lambda i: (i, 0),
                              pipeline_mode=pl.Buffered(3))
    else:
        x_spec = pl.BlockSpec((tm, K), lambda i: (i, 0))

    flops = 2 * M * K * LANE + 2 * M * LANE * LANE
    bytes_accessed = (M * K * 2            # x (bf16)
                      + K * LANE * 2       # stacked sub-model weights (bf16)
                      + LANE * LANE * 2    # classifier weights (bf16)
                      + 2 * LANE * 4       # biases (f32)
                      + M * LANE * 4)      # output (f32)
    cost = pl.CostEstimate(flops=flops, transcendentals=M * LANE,
                           bytes_accessed=bytes_accessed)

    # VMEM budget from actual buffer math (x/out up to triple-buffered,
    # resident weights double-buffered) + headroom.
    vmem_bytes = (3 * (tm * K * 2 + tm * LANE * 4)
                  + 2 * (K * LANE * 2 + LANE * LANE * 2 + 2 * LANE * 4)
                  + (2 << 20))
    vmem_limit = int(min(max(vmem_bytes, 4 << 20), 96 << 20))

    return pl.pallas_call(
        kern,
        out_shape=jax.ShapeDtypeStruct((M, LANE), jnp.float32),
        grid=(n_tiles,),
        in_specs=[
            x_spec,
            pl.BlockSpec((K, LANE), lambda i: (0, 0)),
            pl.BlockSpec((1, LANE), lambda i: (0, 0)),
            pl.BlockSpec((LANE, LANE), lambda i: (0, 0)),
            pl.BlockSpec((1, LANE), lambda i: (0, 0)),
        ],
        out_specs=pl.BlockSpec((tm, LANE), lambda i: (i, 0)),
        compiler_params=pltpu.CompilerParams(
            dimension_semantics=("parallel",),
            vmem_limit_bytes=vmem_limit),
        cost_estimate=cost,
    )(x, w_sub, b_sub, w_cls, b_cls)


# --------------------------------------------------------------------------
# Deterministic parameters (packed / padded once, offline)
# --------------------------------------------------------------------------
def make_params(key, d_in):
    ks = jax.random.split(key, 8)
    k_pad = _round_up(d_in, LANE)

    def sub_linear(kw, kb):
        w = (jax.random.normal(kw, (d_in, NSUB), jnp.float32)
             / jnp.sqrt(jnp.float32(d_in)))
        b = jax.random.normal(kb, (NSUB,), jnp.float32) * 0.01
        return w, b

    wa, ba = sub_linear(ks[0], ks[1])
    wb, bb = sub_linear(ks[2], ks[3])
    wc, bc = sub_linear(ks[4], ks[5])

    # classifier: Linear(4 * 3, 4) stored as (12, 4) == torch weight.T
    w_cls = (jax.random.normal(ks[6], (3 * NSUB, NCLS), jnp.float32)
             / jnp.sqrt(jnp.float32(3 * NSUB)))
    b_cls = jax.random.normal(ks[7], (NCLS,), jnp.float32) * 0.01

    # Stack the three sub-model heads into one (k_pad, 128) weight slab so
    # the concat is produced by a single matmul (lanes 0-3 / 4-7 / 8-11).
    w_stack = jnp.zeros((k_pad, LANE), jnp.float32)
    w_stack = w_stack.at[:d_in, 0:NSUB].set(wa)
    w_stack = w_stack.at[:d_in, NSUB:2 * NSUB].set(wb)
    w_stack = w_stack.at[:d_in, 2 * NSUB:3 * NSUB].set(wc)
    b_stack = (jnp.zeros((1, LANE), jnp.float32)
               .at[0, 0:NSUB].set(ba)
               .at[0, NSUB:2 * NSUB].set(bb)
               .at[0, 2 * NSUB:3 * NSUB].set(bc))

    w_cls_pad = jnp.zeros((LANE, LANE), jnp.float32).at[:3 * NSUB, :NCLS].set(w_cls)
    b_cls_pad = jnp.zeros((1, LANE), jnp.float32).at[0, :NCLS].set(b_cls)

    return {
        # packed / bf16 kernel operands
        "w_stack_bf16": w_stack.astype(jnp.bfloat16),
        "b_stack": b_stack,
        "w_cls_bf16": w_cls_pad.astype(jnp.bfloat16),
        "b_cls_pad": b_cls_pad,
        # raw f32 copies for the pure-JAX reference
        "wa": wa, "ba": ba, "wb": wb, "bb": bb, "wc": wc, "bc": bc,
        "w_cls": w_cls, "b_cls": b_cls,
        "k_pad": k_pad, "d_in": d_in,
    }


# --------------------------------------------------------------------------
# Forward pass (== EnsembleModel_linear.forward)
# --------------------------------------------------------------------------
def ensemble_forward(x_nchw, params):
    """x_nchw: (B, C, H, W) float32 -> (B, 4) log-probabilities."""
    B = x_nchw.shape[0]
    x_flat = x_nchw.reshape(B, -1)
    d_in = x_flat.shape[1]
    k_pad = params["k_pad"]
    assert d_in == params["d_in"]

    tm, m_pad = _choose_m_tiling(B)

    xb = x_flat.astype(jnp.bfloat16)
    if m_pad != B or k_pad != d_in:
        xb = jnp.pad(xb, ((0, m_pad - B), (0, k_pad - d_in)))

    out = _pallas_fused_forward(
        xb, params["w_stack_bf16"], params["b_stack"],
        params["w_cls_bf16"], params["b_cls_pad"],
        ncls=NCLS, tm=tm)
    return out[:B, :NCLS]


if __name__ == "__main__":
    key = jax.random.PRNGKey(0)
    pkey, xkey = jax.random.split(key)

    B, C, H, W = 2, 3, 16, 16
    d_in = C * H * W
    params = make_params(pkey, d_in)
    x = jax.random.normal(xkey, (B, C, H, W), jnp.float32)

    out = ensemble_forward(x, params)
    out = jax.block_until_ready(out)

    # shape / sanity checks
    assert out.shape == (B, NCLS), out.shape
    assert bool(jnp.all(jnp.isfinite(out)))
    # log-softmax rows must sum (in prob space) to ~1
    assert bool(jnp.allclose(jnp.sum(jnp.exp(out), axis=1), 1.0, atol=1e-3))

    # pure-JAX reference of the module forward (f32, highest precision);
    # tolerance accounts for the kernel's bf16-input / f32-accumulate path.
    hp = jax.lax.Precision.HIGHEST
    xf = x.reshape(B, -1)
    r1 = jnp.dot(xf, params["wa"], precision=hp) + params["ba"]
    r2 = jnp.dot(xf, params["wb"], precision=hp) + params["bb"]
    r3 = jnp.dot(xf, params["wc"], precision=hp) + params["bc"]
    logits_ref = (jnp.dot(jnp.concatenate([r1, r2, r3], axis=1),
                          params["w_cls"], precision=hp) + params["b_cls"])
    ref = jax.nn.log_softmax(logits_ref, axis=1)
    assert bool(jnp.allclose(out, ref, atol=5e-2, rtol=5e-2)), (out, ref)

    print("KERNEL_OK")
</pallas_src>

<mosaic_0001>
module attributes {stable_mosaic.version = 11 : i64} {
  func.func @_fused_ensemble_kernel(%arg0: i32, %arg1: memref<16x768xbf16, #tpu.memory_space<vmem>>, %arg2: memref<768x128xbf16, #tpu.memory_space<vmem>>, %arg3: memref<1x128xf32, #tpu.memory_space<vmem>>, %arg4: memref<128x128xbf16, #tpu.memory_space<vmem>>, %arg5: memref<1x128xf32, #tpu.memory_space<vmem>>, %arg6: memref<16x128xf32, #tpu.memory_space<vmem>>) attributes {dimension_semantics = [#tpu.dimension_semantics<parallel>], iteration_bounds = array<i64: 1>, scalar_prefetch = 0 : i64, scratch_operands = 0 : i64, tpu.core_type = #tpu.core_type<tc>, window_params = [{transform_indices = @transform_0, window_bounds = array<i64: 16, 768>}, {pipeline_mode = #tpu.pipeline_mode<synchronous>, transform_indices = @transform_1, window_bounds = array<i64: 768, 128>}, {pipeline_mode = #tpu.pipeline_mode<synchronous>, transform_indices = @transform_2, window_bounds = array<i64: 1, 128>}, {pipeline_mode = #tpu.pipeline_mode<synchronous>, transform_indices = @transform_3, window_bounds = array<i64: 128, 128>}, {pipeline_mode = #tpu.pipeline_mode<synchronous>, transform_indices = @transform_4, window_bounds = array<i64: 1, 128>}, {transform_indices = @transform_5, window_bounds = array<i64: 16, 128>}]} {
    %c0 = arith.constant 0 : index
    %c0_0 = arith.constant 0 : index
    %0 = vector.load %arg1[%c0, %c0_0] : memref<16x768xbf16, #tpu.memory_space<vmem>>, vector<16x768xbf16>
    %c0_1 = arith.constant 0 : index
    %c0_2 = arith.constant 0 : index
    %1 = vector.load %arg2[%c0_1, %c0_2] : memref<768x128xbf16, #tpu.memory_space<vmem>>, vector<768x128xbf16>
    %cst = arith.constant dense<0.000000e+00> : vector<16x128xf32>
    %2 = tpu.matmul %0, %1, %cst {dimension_numbers = #tpu.dot_dimension_numbers<[1], [0], [0], [1], [0, 0, 1, 1], [], []>} : vector<16x768xbf16>, vector<768x128xbf16>, vector<16x128xf32> -> vector<16x128xf32>
    %c0_3 = arith.constant 0 : index
    %c0_4 = arith.constant 0 : index
    %3 = vector.load %arg3[%c0_3, %c0_4] : memref<1x128xf32, #tpu.memory_space<vmem>>, vector<1x128xf32>
    %4 = vector.broadcast %3 : vector<1x128xf32> to vector<16x128xf32>
    %5 = arith.addf %2, %4 : vector<16x128xf32>
    %6 = arith.truncf %5 : vector<16x128xf32> to vector<16x128xbf16>
    %c0_5 = arith.constant 0 : index
    %c0_6 = arith.constant 0 : index
    %7 = vector.load %arg4[%c0_5, %c0_6] : memref<128x128xbf16, #tpu.memory_space<vmem>>, vector<128x128xbf16>
    %cst_7 = arith.constant dense<0.000000e+00> : vector<16x128xf32>
    %8 = tpu.matmul %6, %7, %cst_7 {dimension_numbers = #tpu.dot_dimension_numbers<[1], [0], [0], [1], [0, 0, 1, 1], [], []>} : vector<16x128xbf16>, vector<128x128xbf16>, vector<16x128xf32> -> vector<16x128xf32>
    %c0_8 = arith.constant 0 : index
    %c0_9 = arith.constant 0 : index
    %9 = vector.load %arg5[%c0_8, %c0_9] : memref<1x128xf32, #tpu.memory_space<vmem>>, vector<1x128xf32>
    %10 = vector.broadcast %9 : vector<1x128xf32> to vector<16x128xf32>
    %11 = arith.addf %8, %10 : vector<16x128xf32>
    %12 = tpu.iota {dimensions = array<i32: 1>} : vector<16x128xi32>
    %c4_i32 = arith.constant 4 : i32
    %13 = vector.broadcast %c4_i32 : i32 to vector<16x128xi32>
    %14 = arith.cmpi slt, %12, %13 : vector<16x128xi32>
    %cst_10 = arith.constant -1.000000e+30 : f32
    %15 = vector.broadcast %cst_10 : f32 to vector<16x128xf32>
    %16 = arith.select %14, %11, %15 : vector<16x128xi1>, vector<16x128xf32>
    %cst_11 = arith.constant dense<0xFF800000> : vector<16xf32>
    %17 = vector.multi_reduction <maximumf>, %16, %cst_11 [1] : vector<16x128xf32> to vector<16xf32>
    %18 = vector.shape_cast %17 : vector<16xf32> to vector<16x1xf32>
    %19 = vector.broadcast %18 : vector<16x1xf32> to vector<16x128xf32>
    %20 = arith.subf %16, %19 : vector<16x128xf32>
    %21 = math.exp %20 : vector<16x128xf32>
    %cst_12 = arith.constant 0.000000e+00 : f32
    %22 = vector.broadcast %cst_12 : f32 to vector<16x128xf32>
    %23 = arith.select %14, %21, %22 : vector<16x128xi1>, vector<16x128xf32>
    %cst_13 = arith.constant dense<0.000000e+00> : vector<16xf32>
    %24 = vector.multi_reduction <add>, %23, %cst_13 [1] : vector<16x128xf32> to vector<16xf32>
    %25 = vector.shape_cast %24 : vector<16xf32> to vector<16x1xf32>
    %26 = math.log %25 : vector<16x1xf32>
    %27 = vector.broadcast %26 : vector<16x1xf32> to vector<16x128xf32>
    %28 = arith.subf %20, %27 : vector<16x128xf32>
    %c0_14 = arith.constant 0 : index
    %c0_15 = arith.constant 0 : index
    %29 = vector.load %arg6[%c0_14, %c0_15] : memref<16x128xf32, #tpu.memory_space<vmem>>, vector<16x128xf32>
    tpu.vector_store %arg6[%c0_14, %c0_15], %28 {strides = array<i32>} : memref<16x128xf32, #tpu.memory_space<vmem>>, vector<16x128xf32>,
    return
  }
  func.func @transform_0(%arg0: i32) -> (i32, i32) {
    %c0_i32 = arith.constant 0 : i32
    %c0_i32_0 = arith.constant 0 : i32
    return %arg0, %c0_i32 : i32, i32
  }
  func.func @transform_1(%arg0: i32) -> (i32, i32) {
    %c0_i32 = arith.constant 0 : i32
    %c0_i32_0 = arith.constant 0 : i32
    %c0_i32_1 = arith.constant 0 : i32
    return %c0_i32, %c0_i32_0 : i32, i32
  }
  func.func @transform_2(%arg0: i32) -> (i32, i32) {
    %c0_i32 = arith.constant 0 : i32
    %c0_i32_0 = arith.constant 0 : i32
    %c0_i32_1 = arith.constant 0 : i32
    return %c0_i32, %c0_i32_0 : i32, i32
  }
  func.func @transform_3(%arg0: i32) -> (i32, i32) {
    %c0_i32 = arith.constant 0 : i32
    %c0_i32_0 = arith.constant 0 : i32
    %c0_i32_1 = arith.constant 0 : i32
    return %c0_i32, %c0_i32_0 : i32, i32
  }
  func.func @transform_4(%arg0: i32) -> (i32, i32) {
    %c0_i32 = arith.constant 0 : i32
    %c0_i32_0 = arith.constant 0 : i32
    %c0_i32_1 = arith.constant 0 : i32
    return %c0_i32, %c0_i32_0 : i32, i32
  }
  func.func @transform_5(%arg0: i32) -> (i32, i32) {
    %c0_i32 = arith.constant 0 : i32
    %c0_i32_0 = arith.constant 0 : i32
    return %arg0, %c0_i32 : i32, i32
  }
}

</mosaic_0001>

<llo_original>
// kernel: _pallas_fused_forward.1
$region0: #{_pallas_fused_forward.1}
  #allocation0 [shape = 'u32[]', space=smem, size = 0x4, offset = 0x4, fixed_abs, tag = 'smem constant byte address 0x4 - core index']
  #allocation1 [shape = 'u32[144,128]{1,0:T(1,128)}', space=vmem, size = 0x12000, scoped, tag = 'internal scratch']
  %s0 = inlined_call_operand.hbm [shape: bf16[16,768], index: 0, kind: input, shape index: {}]
  %s1 = inlined_call_operand.hbm [shape: bf16[768,128], index: 1, kind: input, shape index: {}]
  %s2 = inlined_call_operand.vmem [shape: f32[1,128], index: 2, kind: input, shape index: {}]
  %s3 = inlined_call_operand.hbm [shape: bf16[128,128], index: 3, kind: input, shape index: {}]
  %s4 = inlined_call_operand.vmem [shape: f32[1,128], index: 4, kind: input, shape index: {}]
  %s5 = inlined_call_operand.hbm [shape: f32[16,128], index: 5, kind: output, shape index: {}]
  %s6 = sld [smem:[#allocation0]]
  $region42: #{_pallas_fused_forward.1} parent=0
    _
  %s8 = ssub.s32 1, %s6
  %s9 = scalar_select 0, %s8, %s6
  $region1: #{_pallas_fused_forward.1} parent=0
    #allocation2 [shape = 'u8[24576]{0}', space=vmem, size = 0x6000, scoped, tag = 'input window, operand 0, single buffered']
    #allocation3 [shape = 's32[1]{0}', space=sflag, size = 0x4, scoped, tag = 'scoped memory for _pallas_fused_forward.1']
    #allocation4 [shape = 's32[1]{0}', space=sflag, size = 0x4, scoped, tag = 'scoped memory for _pallas_fused_forward.1']
    #allocation5 [shape = 'u8[196608]{0}', space=vmem, size = 0x30000, scoped, tag = 'input window, operand 1, single buffered']
    #allocation6 [shape = 's32[1]{0}', space=sflag, size = 0x4, scoped, tag = 'scoped memory for _pallas_fused_forward.1']
    #allocation7 [shape = 'u8[32768]{0}', space=vmem, size = 0x8000, scoped, tag = 'input window, operand 3, single buffered']
    #allocation8 [shape = 'u8[8192]{0}', space=vmem, size = 0x2000, scoped, tag = 'output window, operand 0, single buffered']
    %10 = vsyncpa [#allocation3], 0
    %11 = vsyncpa [#allocation6], 0
    %12 = vsyncpa [#allocation4], 0
    // Predicated region
    $region2: #{_pallas_fused_forward.1} parent=1 // pred_check
      _
    $region3: #{_pallas_fused_forward.1} parent=1 // pred_check_branch
      %14 = sbr.rel (0) target = $region5
    $region4: #{_pallas_fused_forward.1} parent=1 // pred_region
      %s16 = ssub.s32 768, 768
      %17 = vsyncadd [#allocation3], %s16
      %s18 = sshll.u32 [#allocation2], 4
      %s19 = int_to_ptr.vmem [resolvable:$true] %s18
      %24 = dma.hbm_to_vmem [thread:$0]  %s0, 768, %s19, [#allocation3], 384, 384, 24
    $region5: #{_pallas_fused_forward.1} parent=1 // pred_fallthru
      _
    // Predicated region
    $region6: #{_pallas_fused_forward.1} parent=1 // pred_check
      _
    $region7: #{_pallas_fused_forward.1} parent=1 // pred_check_branch
      %26 = sbr.rel (0) target = $region9
    $region8: #{_pallas_fused_forward.1} parent=1 // pred_region
      %s28 = ssub.s32 6144, 6144
      %29 = vsyncadd [#allocation6], %s28
      %s30 = sshll.u32 [#allocation5], 4
      %s31 = int_to_ptr.vmem [resolvable:$true] %s30
      %36 = dma.hbm_to_vmem [thread:$0]  %s1, 6144, %s31, [#allocation6], 64, 64, 4
    $region9: #{_pallas_fused_forward.1} parent=1 // pred_fallthru
      _
    // Predicated region
    $region10: #{_pallas_fused_forward.1} parent=1 // pred_check
      _
    $region11: #{_pallas_fused_forward.1} parent=1 // pred_check_branch
      %38 = sbr.rel (0) target = $region13
    $region12: #{_pallas_fused_forward.1} parent=1 // pred_region
      _
    $region13: #{_pallas_fused_forward.1} parent=1 // pred_fallthru
      _
    // Predicated region
    $region14: #{_pallas_fused_forward.1} parent=1 // pred_check
      _
    $region15: #{_pallas_fused_forward.1} parent=1 // pred_check_branch
      %40 = sbr.rel (0) target = $region17
    $region16: #{_pallas_fused_forward.1} parent=1 // pred_region
      %s42 = ssub.s32 1024, 1024
      %43 = vsyncadd [#allocation6], %s42
      %s44 = sshll.u32 [#allocation7], 4
      %s45 = int_to_ptr.vmem [resolvable:$true] %s44
      %50 = dma.hbm_to_vmem [thread:$0]  %s3, 1024, %s45, [#allocation6], 64, 64, 4
    $region17: #{_pallas_fused_forward.1} parent=1 // pred_fallthru
      _
    // Predicated region
    $region18: #{_pallas_fused_forward.1} parent=1 // pred_check
      _
    $region19: #{_pallas_fused_forward.1} parent=1 // pred_check_branch
      %52 = sbr.rel (0) target = $region21
    $region20: #{_pallas_fused_forward.1} parent=1 // pred_region
      _
    $region21: #{_pallas_fused_forward.1} parent=1 // pred_fallthru
      _
    // Predicated region
    $region22: #{_pallas_fused_forward.1} parent=1 // pred_check
      _
    $region23: #{_pallas_fused_forward.1} parent=1 // pred_check_branch
      %54 = sbr.rel (0) target = $region25
    $region24: #{_pallas_fused_forward.1} parent=1 // pred_region
      %55 = dma.done [#allocation3], 768
    $region25: #{_pallas_fused_forward.1} parent=1 // pred_fallthru
      _
    // Predicated region
    $region26: #{_pallas_fused_forward.1} parent=1 // pred_check
      _
    $region27: #{_pallas_fused_forward.1} parent=1 // pred_check_branch
      %57 = sbr.rel (0) target = $region29
    $region28: #{_pallas_fused_forward.1} parent=1 // pred_region
      %58 = dma.done [#allocation6], 6144
    $region29: #{_pallas_fused_forward.1} parent=1 // pred_fallthru
      _
    // Predicated region
    $region30: #{_pallas_fused_forward.1} parent=1 // pred_check
      _
    $region31: #{_pallas_fused_forward.1} parent=1 // pred_check_branch
      %60 = sbr.rel (0) target = $region33
    $region32: #{_pallas_fused_forward.1} parent=1 // pred_region
      %61 = dma.done [#allocation6], 1024
    $region33: #{_pallas_fused_forward.1} parent=1 // pred_fallthru
      _
    %v63 = vld [vmem:[#allocation2] sm:$0xff]
    %v64 = vld [vmem:[#allocation2 + $0x8] sm:$0xff]
    %v65 = vld [vmem:[#allocation2 + $0x10] sm:$0xff]
    %v66 = vld [vmem:[#allocation2 + $0x18] sm:$0xff]
    %v67 = vld [vmem:[#allocation2 + $0x20] sm:$0xff]
    %v68 = vld [vmem:[#allocation2 + $0x28] sm:$0xff]
    %v69 = vld [vmem:[#allocation5] sm:$0xf]
    %v70 = vld [vmem:[#allocation5 + $0x4] sm:$0xf]
    %v71 = vld [vmem:[#allocation5 + $0x8] sm:$0xf]
    %v72 = vld [vmem:[#allocation5 + $0xc] sm:$0xf]
    %v73 = vld [vmem:[#allocation5 + $0x10] sm:$0xf]
    %v74 = vld [vmem:[#allocation5 + $0x14] sm:$0xf]
    %v75 = vld [vmem:[#allocation5 + $0x18] sm:$0xf]
    %v76 = vld [vmem:[#allocation5 + $0x1c] sm:$0xf]
    %v77 = vld [vmem:[#allocation5 + $0x20] sm:$0xf]
    %v78 = vld [vmem:[#allocation5 + $0x24] sm:$0xf]
    %v79 = vld [vmem:[#allocation5 + $0x28] sm:$0xf]
    %v80 = vld [vmem:[#allocation5 + $0x2c] sm:$0xf]
    %v81 = vld [vmem:[#allocation5 + $0x30] sm:$0xf]
    %v82 = vld [vmem:[#allocation5 + $0x34] sm:$0xf]
    %v83 = vld [vmem:[#allocation5 + $0x38] sm:$0xf]
    %v84 = vld [vmem:[#allocation5 + $0x3c] sm:$0xf]
    %v85 = vld [vmem:[#allocation5 + $0x40] sm:$0xf]
    %v86 = vld [vmem:[#allocation5 + $0x44] sm:$0xf]
    %v87 = vld [vmem:[#allocation5 + $0x48] sm:$0xf]
    %v88 = vld [vmem:[#allocation5 + $0x4c] sm:$0xf]
    %v89 = vld [vmem:[#allocation5 + $0x50] sm:$0xf]
    %v90 = vld [vmem:[#allocation5 + $0x54] sm:$0xf]
    %v91 = vld [vmem:[#allocation5 + $0x58] sm:$0xf]
    %v92 = vld [vmem:[#allocation5 + $0x5c] sm:$0xf]
    %v93 = vld [vmem:[#allocation5 + $0x60] sm:$0xf]
    %v94 = vld [vmem:[#allocation5 + $0x64] sm:$0xf]
    %v95 = vld [vmem:[#allocation5 + $0x68] sm:$0xf]
    %v96 = vld [vmem:[#allocation5 + $0x6c] sm:$0xf]
    %v97 = vld [vmem:[#allocation5 + $0x70] sm:$0xf]
    %v98 = vld [vmem:[#allocation5 + $0x74] sm:$0xf]
    %v99 = vld [vmem:[#allocation5 + $0x78] sm:$0xf]
    %v100 = vld [vmem:[#allocation5 + $0x7c] sm:$0xf]
    %v101 = vld [vmem:[#allocation5 + $0x80] sm:$0xf]
    %v102 = vld [vmem:[#allocation5 + $0x84] sm:$0xf]
    %v103 = vld [vmem:[#allocation5 + $0x88] sm:$0xf]
    %v104 = vld [vmem:[#allocation5 + $0x8c] sm:$0xf]
    %v105 = vld [vmem:[#allocation5 + $0x90] sm:$0xf]
    %v106 = vld [vmem:[#allocation5 + $0x94] sm:$0xf]
    %v107 = vld [vmem:[#allocation5 + $0x98] sm:$0xf]
    %v108 = vld [vmem:[#allocation5 + $0x9c] sm:$0xf]
    %v109 = vld [vmem:[#allocation5 + $0xa0] sm:$0xf]
    %v110 = vld [vmem:[#allocation5 + $0xa4] sm:$0xf]
    %v111 = vld [vmem:[#allocation5 + $0xa8] sm:$0xf]
    %v112 = vld [vmem:[#allocation5 + $0xac] sm:$0xf]
    %v113 = vld [vmem:[#allocation5 + $0xb0] sm:$0xf]
    %v114 = vld [vmem:[#allocation5 + $0xb4] sm:$0xf]
    %v115 = vld [vmem:[#allocation5 + $0xb8] sm:$0xf]
    %v116 = vld [vmem:[#allocation5 + $0xbc] sm:$0xf]
    %v117 = vld [vmem:[#allocation5 + $0xc0] sm:$0xf]
    %v118 = vld [vmem:[#allocation5 + $0xc4] sm:$0xf]
    %v119 = vld [vmem:[#allocation5 + $0xc8] sm:$0xf]
    %v120 = vld [vmem:[#allocation5 + $0xcc] sm:$0xf]
    %v121 = vld [vmem:[#allocation5 + $0xd0] sm:$0xf]
    %v122 = vld [vmem:[#allocation5 + $0xd4] sm:$0xf]
    %v123 = vld [vmem:[#allocation5 + $0xd8] sm:$0xf]
    %v124 = vld [vmem:[#allocation5 + $0xdc] sm:$0xf]
    %v125 = vld [vmem:[#allocation5 + $0xe0] sm:$0xf]
    %v126 = vld [vmem:[#allocation5 + $0xe4] sm:$0xf]
    %v127 = vld [vmem:[#allocation5 + $0xe8] sm:$0xf]
    %v128 = vld [vmem:[#allocation5 + $0xec] sm:$0xf]
    %v129 = vld [vmem:[#allocation5 + $0xf0] sm:$0xf]
    %v130 = vld [vmem:[#allocation5 + $0xf4] sm:$0xf]
    %v131 = vld [vmem:[#allocation5 + $0xf8] sm:$0xf]
    %v132 = vld [vmem:[#allocation5 + $0xfc] sm:$0xf]
    %v133 = vld [vmem:[#allocation5 + $0x100] sm:$0xf]
    %v134 = vld [vmem:[#allocation5 + $0x104] sm:$0xf]
    %v135 = vld [vmem:[#allocation5 + $0x108] sm:$0xf]
    %v136 = vld [vmem:[#allocation5 + $0x10c] sm:$0xf]
    %v137 = vld [vmem:[#allocation5 + $0x110] sm:$0xf]
    %v138 = vld [vmem:[#allocation5 + $0x114] sm:$0xf]
    %v139 = vld [vmem:[#allocation5 + $0x118] sm:$0xf]
    %v140 = vld [vmem:[#allocation5 + $0x11c] sm:$0xf]
    %v141 = vld [vmem:[#allocation5 + $0x120] sm:$0xf]
    %v142 = vld [vmem:[#allocation5 + $0x124] sm:$0xf]
    %v143 = vld [vmem:[#allocation5 + $0x128] sm:$0xf]
    %v144 = vld [vmem:[#allocation5 + $0x12c] sm:$0xf]
    %v145 = vld [vmem:[#allocation5 + $0x130] sm:$0xf]
    %v146 = vld [vmem:[#allocation5 + $0x134] sm:$0xf]
    %v147 = vld [vmem:[#allocation5 + $0x138] sm:$0xf]
    %v148 = vld [vmem:[#allocation5 + $0x13c] sm:$0xf]
    %v149 = vld [vmem:[#allocation5 + $0x140] sm:$0xf]
    %v150 = vld [vmem:[#allocation5 + $0x144] sm:$0xf]
    %v151 = vld [vmem:[#allocation5 + $0x148] sm:$0xf]
    %v152 = vld [vmem:[#allocation5 + $0x14c] sm:$0xf]
    %v153 = vld [vmem:[#allocation5 + $0x150] sm:$0xf]
    %v154 = vld [vmem:[#allocation5 + $0x154] sm:$0xf]
    %v155 = vld [vmem:[#allocation5 + $0x158] sm:$0xf]
    %v156 = vld [vmem:[#allocation5 + $0x15c] sm:$0xf]
    %v157 = vld [vmem:[#allocation5 + $0x160] sm:$0xf]
    %v158 = vld [vmem:[#allocation5 + $0x164] sm:$0xf]
    %v159 = vld [vmem:[#allocation5 + $0x168] sm:$0xf]
    %v160 = vld [vmem:[#allocation5 + $0x16c] sm:$0xf]
    %v161 = vld [vmem:[#allocation5 + $0x170] sm:$0xf]
    %v162 = vld [vmem:[#allocation5 + $0x174] sm:$0xf]
    %v163 = vld [vmem:[#allocation5 + $0x178] sm:$0xf]
    %v164 = vld [vmem:[#allocation5 + $0x17c] sm:$0xf]
    %v165 = vld [vmem:[%s2] sm:$0x1]
    %v167 = vlaneseq
    %v168 = vshrl.u32 %v167, 7
    %v169 = vsub.s32 0, %v168
    %v170 = vrot.slane %v165, %v169
    %v178 = vunpack.c.l.b16 %v63
    %v179 = vunpack.c.h.b16 %v63
    %v180 = vunpack.c.l.b16 %v64
    %v181 = vunpack.c.h.b16 %v64
    %v182 = vunpack.c.l.b16 %v65
    %v183 = vunpack.c.h.b16 %v65
    %v184 = vunpack.c.l.b16 %v66
    %v185 = vunpack.c.h.b16 %v66
    %v186 = vunpack.c.l.b16 %v67
    %v187 = vunpack.c.h.b16 %v67
    %v188 = vunpack.c.l.b16 %v68
    %v189 = vunpack.c.h.b16 %v68
    %v190 = vpack.c.b16 %v184, %v178
    %v191 = vpack.c.b16 %v185, %v179
    %v192 = vpack.c.b16 %v186, %v180
    %v193 = vpack.c.b16 %v187, %v181
    %v194 = vpack.c.b16 %v188, %v182
    %v195 = vpack.c.b16 %v189, %v183
    %v298 = vunpack.c.l.b16 %v69
    %v299 = vunpack.c.l.b16 %v70
    %v300 = vunpack.c.l.b16 %v71
    %v301 = vunpack.c.l.b16 %v72
    %v302 = vunpack.c.l.b16 %v73
    %v303 = vunpack.c.l.b16 %v74
    %v304 = vunpack.c.l.b16 %v75
    %v305 = vunpack.c.l.b16 %v76
    %v306 = vunpack.c.l.b16 %v77
    %v307 = vunpack.c.l.b16 %v78
    %v308 = vunpack.c.l.b16 %v79
    %v309 = vunpack.c.l.b16 %v80
    %v310 = vunpack.c.l.b16 %v81
    %v311 = vunpack.c.l.b16 %v82
    %v312 = vunpack.c.l.b16 %v83
    %v313 = vunpack.c.l.b16 %v84
    %v314 = vunpack.c.l.b16 %v85
    %v315 = vunpack.c.l.b16 %v86
    %v316 = vunpack.c.l.b16 %v87
    %v317 = vunpack.c.l.b16 %v88
    %v318 = vunpack.c.l.b16 %v89
    %v319 = vunpack.c.l.b16 %v90
    %v320 = vunpack.c.l.b16 %v91
    %v321 = vunpack.c.l.b16 %v92
    %v322 = vunpack.c.l.b16 %v93
    %v323 = vunpack.c.l.b16 %v94
    %v324 = vunpack.c.l.b16 %v95
    %v325 = vunpack.c.l.b16 %v96
    %v326 = vunpack.c.l.b16 %v97
    %v327 = vunpack.c.l.b16 %v98
    %v328 = vunpack.c.l.b16 %v99
    %v329 = vunpack.c.l.b16 %v100
    %v330 = vunpack.c.l.b16 %v101
    %v331 = vunpack.c.l.b16 %v102
    %v332 = vunpack.c.l.b16 %v103
    %v333 = vunpack.c.l.b16 %v104
    %v334 = vunpack.c.l.b16 %v105
    %v335 = vunpack.c.l.b16 %v106
    %v336 = vunpack.c.l.b16 %v107
    %v337 = vunpack.c.l.b16 %v108
    %v338 = vunpack.c.l.b16 %v109
    %v339 = vunpack.c.l.b16 %v110
    %v340 = vunpack.c.l.b16 %v111
    %v341 = vunpack.c.l.b16 %v112
    %v342 = vunpack.c.l.b16 %v113
    %v343 = vunpack.c.l.b16 %v114
    %v344 = vunpack.c.l.b16 %v115
    %v345 = vunpack.c.l.b16 %v116
    %v346 = vunpack.c.l.b16 %v117
    %v347 = vunpack.c.l.b16 %v118
    %v348 = vunpack.c.l.b16 %v119
    %v349 = vunpack.c.l.b16 %v120
    %v350 = vunpack.c.l.b16 %v121
    %v351 = vunpack.c.l.b16 %v122
    %v352 = vunpack.c.l.b16 %v123
    %v353 = vunpack.c.l.b16 %v124
    %v354 = vunpack.c.l.b16 %v125
    %v355 = vunpack.c.l.b16 %v126
    %v356 = vunpack.c.l.b16 %v127
    %v357 = vunpack.c.l.b16 %v128
    %v358 = vunpack.c.l.b16 %v129
    %v359 = vunpack.c.l.b16 %v130
    %v360 = vunpack.c.l.b16 %v131
    %v361 = vunpack.c.l.b16 %v132
    %v362 = vunpack.c.l.b16 %v133
    %v363 = vunpack.c.l.b16 %v134
    %v364 = vunpack.c.l.b16 %v135
    %v365 = vunpack.c.l.b16 %v136
    %v366 = vunpack.c.l.b16 %v137
    %v367 = vunpack.c.l.b16 %v138
    %v368 = vunpack.c.l.b16 %v139
    %v369 = vunpack.c.l.b16 %v140
    %v370 = vunpack.c.l.b16 %v141
    %v371 = vunpack.c.l.b16 %v142
    %v372 = vunpack.c.l.b16 %v143
    %v373 = vunpack.c.l.b16 %v144
    %v374 = vunpack.c.l.b16 %v145
    %v375 = vunpack.c.l.b16 %v146
    %v376 = vunpack.c.l.b16 %v147
    %v377 = vunpack.c.l.b16 %v148
    %v378 = vunpack.c.l.b16 %v149
    %v379 = vunpack.c.l.b16 %v150
    %v380 = vunpack.c.l.b16 %v151
    %v381 = vunpack.c.l.b16 %v152
    %v382 = vunpack.c.l.b16 %v153
    %v383 = vunpack.c.l.b16 %v154
    %v384 = vunpack.c.l.b16 %v155
    %v385 = vunpack.c.l.b16 %v156
    %v386 = vunpack.c.l.b16 %v157
    %v387 = vunpack.c.l.b16 %v158
    %v388 = vunpack.c.l.b16 %v159
    %v389 = vunpack.c.l.b16 %v160
    %v390 = vunpack.c.l.b16 %v161
    %v391 = vunpack.c.l.b16 %v162
    %v392 = vunpack.c.l.b16 %v163
    %v393 = vunpack.c.l.b16 %v164
    %v394 = vpack.c.b16 %v299, %v298
    %v395 = vpack.c.b16 %v301, %v300
    %v396 = vpack.c.b16 %v303, %v302
    %v397 = vpack.c.b16 %v305, %v304
    %v398 = vpack.c.b16 %v307, %v306
    %v399 = vpack.c.b16 %v309, %v308
    %v400 = vpack.c.b16 %v311, %v310
    %v401 = vpack.c.b16 %v313, %v312
    %v402 = vpack.c.b16 %v315, %v314
    %v403 = vpack.c.b16 %v317, %v316
    %v404 = vpack.c.b16 %v319, %v318
    %v405 = vpack.c.b16 %v321, %v320
    %v406 = vpack.c.b16 %v323, %v322
    %v407 = vpack.c.b16 %v325, %v324
    %v408 = vpack.c.b16 %v327, %v326
    %v409 = vpack.c.b16 %v329, %v328
    %v410 = vpack.c.b16 %v331, %v330
    %v411 = vpack.c.b16 %v333, %v332
    %v412 = vpack.c.b16 %v335, %v334
    %v413 = vpack.c.b16 %v337, %v336
    %v414 = vpack.c.b16 %v339, %v338
    %v415 = vpack.c.b16 %v341, %v340
    %v416 = vpack.c.b16 %v343, %v342
    %v417 = vpack.c.b16 %v345, %v344
    %v418 = vpack.c.b16 %v347, %v346
    %v419 = vpack.c.b16 %v349, %v348
    %v420 = vpack.c.b16 %v351, %v350
    %v421 = vpack.c.b16 %v353, %v352
    %v422 = vpack.c.b16 %v355, %v354
    %v423 = vpack.c.b16 %v357, %v356
    %v424 = vpack.c.b16 %v359, %v358
    %v425 = vpack.c.b16 %v361, %v360
    %v426 = vpack.c.b16 %v363, %v362
    %v427 = vpack.c.b16 %v365, %v364
    %v428 = vpack.c.b16 %v367, %v366
    %v429 = vpack.c.b16 %v369, %v368
    %v430 = vpack.c.b16 %v371, %v370
    %v431 = vpack.c.b16 %v373, %v372
    %v432 = vpack.c.b16 %v375, %v374
    %v433 = vpack.c.b16 %v377, %v376
    %v434 = vpack.c.b16 %v379, %v378
    %v435 = vpack.c.b16 %v381, %v380
    %v436 = vpack.c.b16 %v383, %v382
    %v437 = vpack.c.b16 %v385, %v384
    %v438 = vpack.c.b16 %v387, %v386
    %v439 = vpack.c.b16 %v389, %v388
    %v440 = vpack.c.b16 %v391, %v390
    %v441 = vpack.c.b16 %v393, %v392
    %490 = vmatprep.subr.bf16.mxu0 0
    %491 = vmatpush1.bf16.msra.mxu0 %v394
    %492 = vmatprep.subr.bf16.mxu0 0
    %493 = vmatpush1.bf16.msra.mxu0 %v395
    %494 = vmatprep.subr.bf16.mxu0 0
    %495 = vmatpush1.bf16.msra.mxu0 %v396
    %496 = vmatprep.subr.bf16.mxu0 0
    %497 = vmatpush1.bf16.msra.mxu0 %v397
    %498 = vmatprep.subr.bf16.mxu0 0
    %499 = vmatpush1.bf16.msra.mxu0 %v398
    %500 = vmatprep.subr.bf16.mxu0 0
    %501 = vmatpush1.bf16.msra.mxu0 %v399
    %502 = vmatprep.subr.bf16.mxu0 0
    %503 = vmatpush1.bf16.msra.mxu0 %v400
    %504 = vmatprep.subr.bf16.mxu0 0
    %505 = vmatpush1.bf16.msra.mxu0 %v401
    %506 = vmatprep.subr.bf16.mxu0 0
    %507 = vmatpush1.bf16.msra.mxu0 %v402
    %508 = vmatprep.subr.bf16.mxu0 0
    %509 = vmatpush1.bf16.msra.mxu0 %v403
    %510 = vmatprep.subr.bf16.mxu0 0
    %511 = vmatpush1.bf16.msra.mxu0 %v404
    %512 = vmatprep.subr.bf16.mxu0 0
    %513 = vmatpush1.bf16.msra.mxu0 %v405
    %514 = vmatprep.subr.bf16.mxu0 0
    %515 = vmatpush1.bf16.msra.mxu0 %v406
    %516 = vmatprep.subr.bf16.mxu0 0
    %517 = vmatpush1.bf16.msra.mxu0 %v407
    %518 = vmatprep.subr.bf16.mxu0 0
    %519 = vmatpush1.bf16.msra.mxu0 %v408
    %520 = vmatprep.subr.bf16.mxu0 0
    %521 = vmatpush1.bf16.msra.mxu0 %v409
    %522 = vmatprep.mubr.bf16.mxu0 %v191
    %523 = vmatmul.mubr.bf16.gmra.mrb[0].mxu0 %v190
    %v524 = vpop.f32.mrb[0].mxu0
    %v525 = vadd.f32 %v170, %v524
    %v526 = vpop.f32.mrb[0].mxu0
    %v527 = vpop.f32.mrb[0].mxu0
    %v528 = vadd.f32 %v170, %v527
    %v529 = vpop.f32.mrb[0].mxu0
    %530 = vdwg.mxu0
    %531 = vmatprep.subr.bf16.mxu0 0
    %532 = vmatpush1.bf16.msra.mxu0 %v410
    %533 = vmatprep.subr.bf16.mxu0 0
    %534 = vmatpush1.bf16.msra.mxu0 %v411
    %535 = vmatprep.subr.bf16.mxu0 0
    %536 = vmatpush1.bf16.msra.mxu0 %v412
    %537 = vmatprep.subr.bf16.mxu0 0
    %538 = vmatpush1.bf16.msra.mxu0 %v413
    %539 = vmatprep.subr.bf16.mxu0 0
    %540 = vmatpush1.bf16.msra.mxu0 %v414
    %541 = vmatprep.subr.bf16.mxu0 0
    %542 = vmatpush1.bf16.msra.mxu0 %v415
    %543 = vmatprep.subr.bf16.mxu0 0
    %544 = vmatpush1.bf16.msra.mxu0 %v416
    %545 = vmatprep.subr.bf16.mxu0 0
    %546 = vmatpush1.bf16.msra.mxu0 %v417
    %547 = vmatprep.subr.bf16.mxu0 0
    %548 = vmatpush1.bf16.msra.mxu0 %v418
    %549 = vmatprep.subr.bf16.mxu0 0
    %550 = vmatpush1.bf16.msra.mxu0 %v419
    %551 = vmatprep.subr.bf16.mxu0 0
    %552 = vmatpush1.bf16.msra.mxu0 %v420
    %553 = vmatprep.subr.bf16.mxu0 0
    %554 = vmatpush1.bf16.msra.mxu0 %v421
    %555 = vmatprep.subr.bf16.mxu0 0
    %556 = vmatpush1.bf16.msra.mxu0 %v422
    %557 = vmatprep.subr.bf16.mxu0 0
    %558 = vmatpush1.bf16.msra.mxu0 %v423
    %559 = vmatprep.subr.bf16.mxu0 0
    %560 = vmatpush1.bf16.msra.mxu0 %v424
    %561 = vmatprep.subr.bf16.mxu0 0
    %562 = vmatpush1.bf16.msra.mxu0 %v425
    %563 = vmatprep.mubr.bf16.mxu0 %v193
    %564 = vmatmul.mubr.bf16.gmra.mrb[0].mxu0 %v192
    %v565 = vpop.f32.mrb[0].mxu0
    %v566 = vadd.f32 %v525, %v565
    %v567 = vpop.f32.mrb[0].mxu0
    %v568 = vpop.f32.mrb[0].mxu0
    %v569 = vadd.f32 %v528, %v568
    %v570 = vpop.f32.mrb[0].mxu0
    %571 = vdwg.mxu0
    %572 = vmatprep.subr.bf16.mxu0 0
    %573 = vmatpush1.bf16.msra.mxu0 %v426
    %574 = vmatprep.subr.bf16.mxu0 0
    %575 = vmatpush1.bf16.msra.mxu0 %v427
    %576 = vmatprep.subr.bf16.mxu0 0
    %577 = vmatpush1.bf16.msra.mxu0 %v428
    %578 = vmatprep.subr.bf16.mxu0 0
    %579 = vmatpush1.bf16.msra.mxu0 %v429
    %580 = vmatprep.subr.bf16.mxu0 0
    %581 = vmatpush1.bf16.msra.mxu0 %v430
    %582 = vmatprep.subr.bf16.mxu0 0
    %583 = vmatpush1.bf16.msra.mxu0 %v431
    %584 = vmatprep.subr.bf16.mxu0 0
    %585 = vmatpush1.bf16.msra.mxu0 %v432
    %586 = vmatprep.subr.bf16.mxu0 0
    %587 = vmatpush1.bf16.msra.mxu0 %v433
    %588 = vmatprep.subr.bf16.mxu0 0
    %589 = vmatpush1.bf16.msra.mxu0 %v434
    %590 = vmatprep.subr.bf16.mxu0 0
    %591 = vmatpush1.bf16.msra.mxu0 %v435
    %592 = vmatprep.subr.bf16.mxu0 0
    %593 = vmatpush1.bf16.msra.mxu0 %v436
    %594 = vmatprep.subr.bf16.mxu0 0
    %595 = vmatpush1.bf16.msra.mxu0 %v437
    %596 = vmatprep.subr.bf16.mxu0 0
    %597 = vmatpush1.bf16.msra.mxu0 %v438
    %598 = vmatprep.subr.bf16.mxu0 0
    %599 = vmatpush1.bf16.msra.mxu0 %v439
    %600 = vmatprep.subr.bf16.mxu0 0
    %601 = vmatpush1.bf16.msra.mxu0 %v440
    %602 = vmatprep.subr.bf16.mxu0 0
    %603 = vmatpush1.bf16.msra.mxu0 %v441
    %604 = vmatprep.mubr.bf16.mxu0 %v195
    %605 = vmatmul.mubr.bf16.gmra.mrb[0].mxu0 %v194
    %v606 = vpop.f32.mrb[0].mxu0
    %v607 = vadd.f32 %v566, %v606
    %v608 = vpop.f32.mrb[0].mxu0
    %v609 = vpop.f32.mrb[0].mxu0
    %v610 = vadd.f32 %v569, %v609
    %v611 = vpop.f32.mrb[0].mxu0
    %612 = vdwg.mxu0
    %v613 = vpack.c.bf16 %v610, %v607
    %v614 = vld [vmem:[#allocation7] sm:$0xf]
    %v615 = vld [vmem:[#allocation7 + $0x4] sm:$0xf]
    %v616 = vld [vmem:[#allocation7 + $0x8] sm:$0xf]
    %v617 = vld [vmem:[#allocation7 + $0xc] sm:$0xf]
    %v618 = vld [vmem:[#allocation7 + $0x10] sm:$0xf]
    %v619 = vld [vmem:[#allocation7 + $0x14] sm:$0xf]
    %v620 = vld [vmem:[#allocation7 + $0x18] sm:$0xf]
    %v621 = vld [vmem:[#allocation7 + $0x1c] sm:$0xf]
    %v622 = vld [vmem:[#allocation7 + $0x20] sm:$0xf]
    %v623 = vld [vmem:[#allocation7 + $0x24] sm:$0xf]
    %v624 = vld [vmem:[#allocation7 + $0x28] sm:$0xf]
    %v625 = vld [vmem:[#allocation7 + $0x2c] sm:$0xf]
    %v626 = vld [vmem:[#allocation7 + $0x30] sm:$0xf]
    %v627 = vld [vmem:[#allocation7 + $0x34] sm:$0xf]
    %v628 = vld [vmem:[#allocation7 + $0x38] sm:$0xf]
    %v629 = vld [vmem:[#allocation7 + $0x3c] sm:$0xf]
    %v630 = vld [vmem:[%s4] sm:$0x1]
    %v632 = vlaneseq
    %v633 = vshrl.u32 %v632, 7
    %v634 = vsub.s32 0, %v633
    %v635 = vrot.slane %v630, %v634
    %v653 = vunpack.c.l.b16 %v614
    %v654 = vunpack.c.l.b16 %v615
    %v655 = vunpack.c.l.b16 %v616
    %v656 = vunpack.c.l.b16 %v617
    %v657 = vunpack.c.l.b16 %v618
    %v658 = vunpack.c.l.b16 %v619
    %v659 = vunpack.c.l.b16 %v620
    %v660 = vunpack.c.l.b16 %v621
    %v661 = vunpack.c.l.b16 %v622
    %v662 = vunpack.c.l.b16 %v623
    %v663 = vunpack.c.l.b16 %v624
    %v664 = vunpack.c.l.b16 %v625
    %v665 = vunpack.c.l.b16 %v626
    %v666 = vunpack.c.l.b16 %v627
    %v667 = vunpack.c.l.b16 %v628
    %v668 = vunpack.c.l.b16 %v629
    %v669 = vpack.c.b16 %v654, %v653
    %v670 = vpack.c.b16 %v656, %v655
    %v671 = vpack.c.b16 %v658, %v657
    %v672 = vpack.c.b16 %v660, %v659
    %v673 = vpack.c.b16 %v662, %v661
    %v674 = vpack.c.b16 %v664, %v663
    %v675 = vpack.c.b16 %v666, %v665
    %v676 = vpack.c.b16 %v668, %v667
    %685 = vmatprep.subr.bf16.mxu0 0
    %686 = vmatpush1.bf16.msra.mxu0 %v669
    %687 = vmatprep.subr.bf16.mxu0 0
    %688 = vmatpush1.bf16.msra.mxu0 %v670
    %689 = vmatprep.subr.bf16.mxu0 0
    %690 = vmatpush1.bf16.msra.mxu0 %v671
    %691 = vmatprep.subr.bf16.mxu0 0
    %692 = vmatpush1.bf16.msra.mxu0 %v672
    %693 = vmatprep.subr.bf16.mxu0 0
    %694 = vmatpush1.bf16.msra.mxu0 %v673
    %695 = vmatprep.subr.bf16.mxu0 0
    %696 = vmatpush1.bf16.msra.mxu0 %v674
    %697 = vmatprep.subr.bf16.mxu0 0
    %698 = vmatpush1.bf16.msra.mxu0 %v675
    %699 = vmatprep.subr.bf16.mxu0 0
    %700 = vmatpush1.bf16.msra.mxu0 %v676
    %701 = vmatprep.subr.bf16.mxu0 0
    %702 = vmatpush1.bf16.msra.mxu0 0
    %703 = vmatprep.subr.bf16.mxu0 0
    %704 = vmatpush1.bf16.msra.mxu0 0
    %705 = vmatprep.subr.bf16.mxu0 0
    %706 = vmatpush1.bf16.msra.mxu0 0
    %707 = vmatprep.subr.bf16.mxu0 0
    %708 = vmatpush1.bf16.msra.mxu0 0
    %709 = vmatprep.subr.bf16.mxu0 0
    %710 = vmatpush1.bf16.msra.mxu0 0
    %711 = vmatprep.subr.bf16.mxu0 0
    %712 = vmatpush1.bf16.msra.mxu0 0
    %713 = vmatprep.subr.bf16.mxu0 0
    %714 = vmatpush1.bf16.msra.mxu0 0
    %715 = vmatprep.subr.bf16.mxu0 0
    %716 = vmatpush1.bf16.msra.mxu0 0
    %717 = vmatprep.mubr.bf16.mxu0 0
    %718 = vmatmul.mubr.bf16.gmra.mrb[0].mxu0 %v613
    %v719 = vpop.f32.mrb[0].mxu0
    %v720 = vadd.f32 %v635, %v719
    %v721 = vpop.f32.mrb[0].mxu0
    %v722 = vpop.f32.mrb[0].mxu0
    %v723 = vadd.f32 %v635, %v722
    %v724 = vpop.f32.mrb[0].mxu0
    %725 = vdwg.mxu0
    %v726 = vlaneseq
    %v727 = vand.u32 %v726, 127
    %vm728 = vcmp.lt.s32.totalorder %v727, 4
    %v729 = vsel %vm728, %v720, -1e+30
    %v730 = vsel %vm728, %v723, -1e+30
    %731 = vmax.xlane.f32.xlu0 %v729
    %v732 = vpop.xlane.xlu0 %731
    %733 = vmax.xlane.f32.xlu0 %v730
    %v734 = vpop.xlane.xlu0 %733
    %v735 = vsub.f32 %v729, %v732
    %v736 = vsub.f32 %v730, %v734
    %v737 = vmul.f32 %v735, 1.442695
    %v738 = vpow.pop %v737
    %v739 = vmul.f32 %v736, 1.442695
    %v740 = vpow.pop %v739
    %v741 = vsel %vm728, %v738, 0.0
    %v742 = vsel %vm728, %v740, 0.0
    %743 = vadd.xlane.f32.xlu0 %v741
    %v744 = vpop.xlane.xlu0 %743
    %745 = vadd.xlane.f32.xlu0 %v742
    %v746 = vpop.xlane.xlu0 %745
    %v747 = vlog2.pop %v744
    %v748 = vmul.f32 %v747, 0.6931472
    %v749 = vlog2.pop %v746
    %v750 = vmul.f32 %v749, 0.6931472
    %v751 = vsub.f32 %v735, %v748
    %v752 = vsub.f32 %v736, %v750
    %753 = vst [vmem:[#allocation8] sm:$0xff] %v751
    %754 = vst [vmem:[#allocation8 + $0x8] sm:$0xff] %v752
    // Predicated region
    $region34: #{_pallas_fused_forward.1} parent=1 // pred_check
      _
    $region35: #{_pallas_fused_forward.1} parent=1 // pred_check_branch
      %756 = sbr.rel (0) target = $region37
    $region36: #{_pallas_fused_forward.1} parent=1 // pred_region
      %s758 = ssub.s32 256, 256
      %759 = vsyncadd [#allocation4], %s758
      %s760 = sshll.u32 [#allocation8], 4
      %s761 = int_to_ptr.vmem [resolvable:$true] %s760
      %766 = dma.vmem_to_hbm [thread:$0]  %s761, 256, %s5, [#allocation4], 128, 128, 8
    $region37: #{_pallas_fused_forward.1} parent=1 // pred_fallthru
      _
    // Predicated region
    $region38: #{_pallas_fused_forward.1} parent=1 // pred_check
      _
    $region39: #{_pallas_fused_forward.1} parent=1 // pred_check_branch
      %768 = sbr.rel (0) target = $region41
    $region40: #{_pallas_fused_forward.1} parent=1 // pred_region
      %769 = dma.done [#allocation4], 256
    $region41: #{_pallas_fused_forward.1} parent=1 // pred_fallthru
      _
    %770 = vsyncpa [#allocation3], 1
    %771 = vsyncpa [#allocation6], 1
    %772 = vsyncpa [#allocation4], 1

</llo_original>
